<compile_context>
chip_gen: v6e
topology: v6e:2x2x1
jax: 0.10.0
libtpu: 0.0.40
codegen_flags: <defaults>
</compile_context>

<pallas_src>
import functools

import jax
import jax.numpy as jnp
import numpy as np
from jax.experimental import pallas as pl
from jax.experimental.pallas import tpu as pltpu


def _logreg_kernel(x_ref, w_ref, b_ref, o_ref):
    # x_ref: (TILE_M, P*F), w_ref: (P*F, P*C) block-diag W^T (resident),
    # b_ref: (1, P*C) tiled bias, o_ref: (TILE_M, P*C) lane-dense output.
    y = jnp.dot(x_ref[...], w_ref[...], preferred_element_type=jnp.float32)
    o_ref[...] = (y + b_ref[...]).astype(o_ref.dtype)


def _pack_factor(num_classes):
    # Pack P rows per wide row so the output last dim (P*C) is exactly 128
    # lanes. Fall back to no packing if C does not divide 128.
    if num_classes >= 128 or 128 % num_classes != 0:
        return 1
    return 128 // num_classes


@functools.partial(jax.jit, static_argnames=("tile_rows", "use_bf16"))
def logreg_forward(x, weight, bias, *, tile_rows=None, use_bf16=False):
    """nn.Linear forward: y = x @ weight.T + bias.

    x: (N, F) f32, weight: (C, F) f32 (PyTorch layout), bias: (C,) f32.
    """
    N, F = x.shape
    C = weight.shape[0]
    P = _pack_factor(C)

    # Pad batch to a multiple of the pack factor (zero rows, sliced off below).
    N_pad = ((N + P - 1) // P) * P
    if N_pad != N:
        x = jnp.pad(x, ((0, N_pad - N), (0, 0)))
    M = N_pad // P          # packed rows
    KF = P * F              # packed contraction dim (multiple of 128 when P>1)
    KC = P * C              # packed, lane-dense output dim (=128 when P>1)

    # Free row-major repack: packed row r = original rows [r*P, (r+1)*P).
    x_packed = x.reshape(M, KF)

    # Block-diagonal weight: P copies of W^T on the diagonal -> (KF, KC).
    wt = weight.T                                   # (F, C), wrapper-side transpose
    eye = jnp.eye(P, dtype=weight.dtype)            # (P, P)
    w_bd = (eye[:, None, :, None] * wt[None, :, None, :]).reshape(KF, KC)
    b_tiled = jnp.tile(bias.reshape(1, C), (1, P))  # (1, KC): bias per C-block

    in_dtype = jnp.bfloat16 if use_bf16 else x.dtype
    x_packed = x_packed.astype(in_dtype)
    w_bd = w_bd.astype(in_dtype)

    # Batch tile in packed rows. Default 2048 packed rows (= 32768 original
    # rows at P=16, ~5 MiB double-buffered); small inputs -> one block.
    if tile_rows is None:
        tile_rows = 2048
    tile_rows = min(tile_rows, M)
    if tile_rows < M:
        tile_rows = max(8, (tile_rows // 8) * 8)    # sublane alignment when tiling

    grid = (pl.cdiv(M, tile_rows),)
    itemsize = jnp.dtype(in_dtype).itemsize

    # Precise VMEM working set: double-buffered x/out tiles + resident W/bias,
    # +25% headroom.  Clamped to v7x-safe limits.
    vmem_bytes = (2 * tile_rows * KF * itemsize     # x tiles (double-buffered)
                  + 2 * tile_rows * KC * 4          # out tiles (double-buffered)
                  + 2 * KF * KC * itemsize          # weight (conservative 2x)
                  + KC * 4)                         # bias
    vmem_limit = int(min(max(int(vmem_bytes * 1.25), 4 << 20), 64 << 20))

    cost = pl.CostEstimate(
        flops=2 * N_pad * F * C,
        transcendentals=0,
        bytes_accessed=itemsize * (N_pad * F + KF * KC) + 4 * (N_pad * C + KC),
    )

    grid_spec = pl.GridSpec(
        grid=grid,
        in_specs=[
            pl.BlockSpec((tile_rows, KF), lambda i: (i, 0)),  # x: streamed per tile
            pl.BlockSpec((KF, KC), lambda i: (0, 0)),         # weight: resident
            pl.BlockSpec((1, KC), lambda i: (0, 0)),          # bias: resident
        ],
        out_specs=pl.BlockSpec((tile_rows, KC), lambda i: (i, 0)),
    )

    out_packed = pl.pallas_call(
        _logreg_kernel,
        out_shape=jax.ShapeDtypeStruct((M, KC), jnp.float32),
        grid_spec=grid_spec,
        compiler_params=pltpu.CompilerParams(
            dimension_semantics=("parallel",),  # independent batch tiles -> v7x megacore
            vmem_limit_bytes=vmem_limit,
        ),
        cost_estimate=cost,
    )(x_packed, w_bd, b_tiled)

    # Undo the row packing and drop padded rows.
    return out_packed.reshape(N_pad, C)[:N]


def xavier_uniform(key, shape, dtype=jnp.float32):
    # torch.nn.init.xavier_uniform_ for a Linear weight (out_features, in_features)
    fan_out, fan_in = shape
    limit = float(np.sqrt(6.0 / (fan_in + fan_out)))
    return jax.random.uniform(key, shape, dtype, minval=-limit, maxval=limit)


if __name__ == "__main__":
    num_features = 32
    num_classes = 8
    batch = 256

    key = jax.random.PRNGKey(0)
    k_w, k_x, k_x2 = jax.random.split(key, 3)

    # Deterministic parameter init mirroring LogReg.reset_parameters()
    weight = xavier_uniform(k_w, (num_classes, num_features))  # (C, F)
    bias = jnp.zeros((num_classes,), dtype=jnp.float32)        # (C,)

    # 1) Small batch -> single block, grid=(1,) (the recommended small-N path).
    x = jax.random.normal(k_x, (batch, num_features), dtype=jnp.float32)
    out = jax.block_until_ready(logreg_forward(x, weight, bias))
    ref = x @ weight.T + bias
    np.testing.assert_allclose(np.asarray(out), np.asarray(ref), rtol=1e-5, atol=1e-5)

    # 2) Non-multiple-of-pack batch + forced tiling (grid=(2,)) to exercise the
    #    padding path and the batch-tiled pipeline.
    x2 = jax.random.normal(k_x2, (200, num_features), dtype=jnp.float32)
    out2 = jax.block_until_ready(logreg_forward(x2, weight, bias, tile_rows=8))
    ref2 = x2 @ weight.T + bias
    np.testing.assert_allclose(np.asarray(out2), np.asarray(ref2), rtol=1e-5, atol=1e-5)

    print("KERNEL_OK")
</pallas_src>

<mosaic_0001>
module attributes {stable_mosaic.version = 11 : i64} {
  func.func @_logreg_kernel(%arg0: i32, %arg1: memref<16x512xf32, #tpu.memory_space<vmem>>, %arg2: memref<512x128xf32, #tpu.memory_space<vmem>>, %arg3: memref<1x128xf32, #tpu.memory_space<vmem>>, %arg4: memref<16x128xf32, #tpu.memory_space<vmem>>) attributes {dimension_semantics = [#tpu.dimension_semantics<parallel>], iteration_bounds = array<i64: 1>, scalar_prefetch = 0 : i64, scratch_operands = 0 : i64, tpu.core_type = #tpu.core_type<tc>, window_params = [{transform_indices = @transform_0, window_bounds = array<i64: 16, 512>}, {pipeline_mode = #tpu.pipeline_mode<synchronous>, transform_indices = @transform_1, window_bounds = array<i64: 512, 128>}, {pipeline_mode = #tpu.pipeline_mode<synchronous>, transform_indices = @transform_2, window_bounds = array<i64: 1, 128>}, {transform_indices = @transform_3, window_bounds = array<i64: 16, 128>}]} {
    %c0 = arith.constant 0 : index
    %c0_0 = arith.constant 0 : index
    %0 = vector.load %arg1[%c0, %c0_0] : memref<16x512xf32, #tpu.memory_space<vmem>>, vector<16x512xf32>
    %c0_1 = arith.constant 0 : index
    %c0_2 = arith.constant 0 : index
    %1 = vector.load %arg2[%c0_1, %c0_2] : memref<512x128xf32, #tpu.memory_space<vmem>>, vector<512x128xf32>
    %cst = arith.constant dense<0.000000e+00> : vector<16x128xf32>
    %2 = tpu.matmul %0, %1, %cst {dimension_numbers = #tpu.dot_dimension_numbers<[1], [0], [0], [1], [0, 0, 1, 1], [], []>} : vector<16x512xf32>, vector<512x128xf32>, vector<16x128xf32> -> vector<16x128xf32>
    %c0_3 = arith.constant 0 : index
    %c0_4 = arith.constant 0 : index
    %3 = vector.load %arg3[%c0_3, %c0_4] : memref<1x128xf32, #tpu.memory_space<vmem>>, vector<1x128xf32>
    %4 = vector.broadcast %3 : vector<1x128xf32> to vector<16x128xf32>
    %5 = arith.addf %2, %4 : vector<16x128xf32>
    %c0_5 = arith.constant 0 : index
    %c0_6 = arith.constant 0 : index
    %6 = vector.load %arg4[%c0_5, %c0_6] : memref<16x128xf32, #tpu.memory_space<vmem>>, vector<16x128xf32>
    tpu.vector_store %arg4[%c0_5, %c0_6], %5 {strides = array<i32>} : memref<16x128xf32, #tpu.memory_space<vmem>>, vector<16x128xf32>,
    return
  }
  func.func @transform_0(%arg0: i32) -> (i32, i32) {
    %c0_i32 = arith.constant 0 : i32
    %c0_i32_0 = arith.constant 0 : i32
    return %arg0, %c0_i32 : i32, i32
  }
  func.func @transform_1(%arg0: i32) -> (i32, i32) {
    %c0_i32 = arith.constant 0 : i32
    %c0_i32_0 = arith.constant 0 : i32
    %c0_i32_1 = arith.constant 0 : i32
    return %c0_i32, %c0_i32_0 : i32, i32
  }
  func.func @transform_2(%arg0: i32) -> (i32, i32) {
    %c0_i32 = arith.constant 0 : i32
    %c0_i32_0 = arith.constant 0 : i32
    %c0_i32_1 = arith.constant 0 : i32
    return %c0_i32, %c0_i32_0 : i32, i32
  }
  func.func @transform_3(%arg0: i32) -> (i32, i32) {
    %c0_i32 = arith.constant 0 : i32
    %c0_i32_0 = arith.constant 0 : i32
    return %arg0, %c0_i32 : i32, i32
  }
}

</mosaic_0001>

<llo_original>
// kernel: logreg_forward.1
$region0: #{logreg_forward.1}
  #allocation0 [shape = 'u32[]', space=smem, size = 0x4, offset = 0x4, fixed_abs, tag = 'smem constant byte address 0x4 - core index']
  #allocation1 [shape = 'u32[144,128]{1,0:T(1,128)}', space=vmem, size = 0x12000, scoped, tag = 'internal scratch']
  %s0 = inlined_call_operand.vmem [shape: f32[16,512], index: 0, kind: input, shape index: {}]
  %s1 = inlined_call_operand.vmem [shape: f32[512,128], index: 1, kind: input, shape index: {}]
  %s2 = inlined_call_operand.vmem [shape: f32[1,128], index: 2, kind: input, shape index: {}]
  %s3 = inlined_call_operand.vmem [shape: f32[16,128], index: 3, kind: output, shape index: {}]
  %s4 = sld [smem:[#allocation0]]
  $region22: #{logreg_forward.1} parent=0
    _
  %s6 = ssub.s32 1, %s4
  %s7 = scalar_select 0, %s6, %s4
  // Predicated region
  $region2: #{logreg_forward.1} parent=0 // pred_check
    _
  $region3: #{logreg_forward.1} parent=0 // pred_check_branch
    %9 = sbr.rel (0) target = $region5
  $region4: #{logreg_forward.1} parent=0 // pred_region
    _
  $region5: #{logreg_forward.1} parent=0 // pred_fallthru
    _
  // Predicated region
  $region6: #{logreg_forward.1} parent=0 // pred_check
    _
  $region7: #{logreg_forward.1} parent=0 // pred_check_branch
    %11 = sbr.rel (0) target = $region9
  $region8: #{logreg_forward.1} parent=0 // pred_region
    _
  $region9: #{logreg_forward.1} parent=0 // pred_fallthru
    _
  // Predicated region
  $region10: #{logreg_forward.1} parent=0 // pred_check
    _
  $region11: #{logreg_forward.1} parent=0 // pred_check_branch
    %13 = sbr.rel (0) target = $region13
  $region12: #{logreg_forward.1} parent=0 // pred_region
    _
  $region13: #{logreg_forward.1} parent=0 // pred_fallthru
    _
  %v14 = vld [vmem:[%s0] sm:$0xff]
  %v15 = vld [vmem:[%s0 + $0x8] sm:$0xff]
  %v16 = vld [vmem:[%s0 + $0x10] sm:$0xff]
  %v17 = vld [vmem:[%s0 + $0x18] sm:$0xff]
  %v18 = vld [vmem:[%s0 + $0x20] sm:$0xff]
  %v19 = vld [vmem:[%s0 + $0x28] sm:$0xff]
  %v20 = vld [vmem:[%s0 + $0x30] sm:$0xff]
  %v21 = vld [vmem:[%s0 + $0x38] sm:$0xff]
  %v22 = vld [vmem:[%s1] sm:$0xff]
  %v23 = vld [vmem:[%s1 + $0x8] sm:$0xff]
  %v24 = vld [vmem:[%s1 + $0x10] sm:$0xff]
  %v25 = vld [vmem:[%s1 + $0x18] sm:$0xff]
  %v26 = vld [vmem:[%s1 + $0x20] sm:$0xff]
  %v27 = vld [vmem:[%s1 + $0x28] sm:$0xff]
  %v28 = vld [vmem:[%s1 + $0x30] sm:$0xff]
  %v29 = vld [vmem:[%s1 + $0x38] sm:$0xff]
  %v30 = vld [vmem:[%s1 + $0x40] sm:$0xff]
  %v31 = vld [vmem:[%s1 + $0x48] sm:$0xff]
  %v32 = vld [vmem:[%s1 + $0x50] sm:$0xff]
  %v33 = vld [vmem:[%s1 + $0x58] sm:$0xff]
  %v34 = vld [vmem:[%s1 + $0x60] sm:$0xff]
  %v35 = vld [vmem:[%s1 + $0x68] sm:$0xff]
  %v36 = vld [vmem:[%s1 + $0x70] sm:$0xff]
  %v37 = vld [vmem:[%s1 + $0x78] sm:$0xff]
  %v38 = vld [vmem:[%s1 + $0x80] sm:$0xff]
  %v39 = vld [vmem:[%s1 + $0x88] sm:$0xff]
  %v40 = vld [vmem:[%s1 + $0x90] sm:$0xff]
  %v41 = vld [vmem:[%s1 + $0x98] sm:$0xff]
  %v42 = vld [vmem:[%s1 + $0xa0] sm:$0xff]
  %v43 = vld [vmem:[%s1 + $0xa8] sm:$0xff]
  %v44 = vld [vmem:[%s1 + $0xb0] sm:$0xff]
  %v45 = vld [vmem:[%s1 + $0xb8] sm:$0xff]
  %v46 = vld [vmem:[%s1 + $0xc0] sm:$0xff]
  %v47 = vld [vmem:[%s1 + $0xc8] sm:$0xff]
  %v48 = vld [vmem:[%s1 + $0xd0] sm:$0xff]
  %v49 = vld [vmem:[%s1 + $0xd8] sm:$0xff]
  %v50 = vld [vmem:[%s1 + $0xe0] sm:$0xff]
  %v51 = vld [vmem:[%s1 + $0xe8] sm:$0xff]
  %v52 = vld [vmem:[%s1 + $0xf0] sm:$0xff]
  %v53 = vld [vmem:[%s1 + $0xf8] sm:$0xff]
  %v54 = vld [vmem:[%s1 + $0x100] sm:$0xff]
  %v55 = vld [vmem:[%s1 + $0x108] sm:$0xff]
  %v56 = vld [vmem:[%s1 + $0x110] sm:$0xff]
  %v57 = vld [vmem:[%s1 + $0x118] sm:$0xff]
  %v58 = vld [vmem:[%s1 + $0x120] sm:$0xff]
  %v59 = vld [vmem:[%s1 + $0x128] sm:$0xff]
  %v60 = vld [vmem:[%s1 + $0x130] sm:$0xff]
  %v61 = vld [vmem:[%s1 + $0x138] sm:$0xff]
  %v62 = vld [vmem:[%s1 + $0x140] sm:$0xff]
  %v63 = vld [vmem:[%s1 + $0x148] sm:$0xff]
  %v64 = vld [vmem:[%s1 + $0x150] sm:$0xff]
  %v65 = vld [vmem:[%s1 + $0x158] sm:$0xff]
  %v66 = vld [vmem:[%s1 + $0x160] sm:$0xff]
  %v67 = vld [vmem:[%s1 + $0x168] sm:$0xff]
  %v68 = vld [vmem:[%s1 + $0x170] sm:$0xff]
  %v69 = vld [vmem:[%s1 + $0x178] sm:$0xff]
  %v70 = vld [vmem:[%s1 + $0x180] sm:$0xff]
  %v71 = vld [vmem:[%s1 + $0x188] sm:$0xff]
  %v72 = vld [vmem:[%s1 + $0x190] sm:$0xff]
  %v73 = vld [vmem:[%s1 + $0x198] sm:$0xff]
  %v74 = vld [vmem:[%s1 + $0x1a0] sm:$0xff]
  %v75 = vld [vmem:[%s1 + $0x1a8] sm:$0xff]
  %v76 = vld [vmem:[%s1 + $0x1b0] sm:$0xff]
  %v77 = vld [vmem:[%s1 + $0x1b8] sm:$0xff]
  %v78 = vld [vmem:[%s1 + $0x1c0] sm:$0xff]
  %v79 = vld [vmem:[%s1 + $0x1c8] sm:$0xff]
  %v80 = vld [vmem:[%s1 + $0x1d0] sm:$0xff]
  %v81 = vld [vmem:[%s1 + $0x1d8] sm:$0xff]
  %v82 = vld [vmem:[%s1 + $0x1e0] sm:$0xff]
  %v83 = vld [vmem:[%s1 + $0x1e8] sm:$0xff]
  %v84 = vld [vmem:[%s1 + $0x1f0] sm:$0xff]
  %v85 = vld [vmem:[%s1 + $0x1f8] sm:$0xff]
  %v86 = vld [vmem:[%s2] sm:$0x1]
  %v88 = vlaneseq
  %v89 = vshrl.u32 %v88, 7
  %v90 = vsub.s32 0, %v89
  %v91 = vrot.slane %v86, %v90
  %93 = vmatprep.subr.mxu0 0.0
  %94 = vmatpush1.msra.mxu0 %v37
  %95 = vmatprep.subr.mxu0 0.0
  %96 = vmatpush1.msra.mxu0 %v36
  %97 = vmatprep.subr.mxu0 0.0
  %98 = vmatpush1.msra.mxu0 %v35
  %99 = vmatprep.subr.mxu0 0.0
  %100 = vmatpush1.msra.mxu0 %v34
  %101 = vmatprep.subr.mxu0 0.0
  %102 = vmatpush1.msra.mxu0 %v33
  %103 = vmatprep.subr.mxu0 0.0
  %104 = vmatpush1.msra.mxu0 %v32
  %105 = vmatprep.subr.mxu0 0.0
  %106 = vmatpush1.msra.mxu0 %v31
  %107 = vmatprep.subr.mxu0 0.0
  %108 = vmatpush1.msra.mxu0 %v30
  %109 = vmatprep.subr.mxu0 0.0
  %110 = vmatpush1.msra.mxu0 %v29
  %111 = vmatprep.subr.mxu0 0.0
  %112 = vmatpush1.msra.mxu0 %v28
  %113 = vmatprep.subr.mxu0 0.0
  %114 = vmatpush1.msra.mxu0 %v27
  %115 = vmatprep.subr.mxu0 0.0
  %116 = vmatpush1.msra.mxu0 %v26
  %117 = vmatprep.subr.mxu0 0.0
  %118 = vmatpush1.msra.mxu0 %v25
  %119 = vmatprep.subr.mxu0 0.0
  %120 = vmatpush1.msra.mxu0 %v24
  %121 = vmatprep.subr.mxu0 0.0
  %122 = vmatpush1.msra.mxu0 %v23
  %123 = vmatprep.subr.mxu0 0.0
  %124 = vmatpush1.msra.mxu0 %v22
  %125 = vmatprep.subr.mxu0 0.0
  %126 = vmatpush2.msra.mxu0 %v53
  %127 = vmatprep.subr.mxu0 0.0
  %128 = vmatpush2.msra.mxu0 %v52
  %129 = vmatprep.subr.mxu0 0.0
  %130 = vmatpush2.msra.mxu0 %v51
  %131 = vmatprep.subr.mxu0 0.0
  %132 = vmatpush2.msra.mxu0 %v50
  %133 = vmatprep.subr.mxu0 0.0
  %134 = vmatpush2.msra.mxu0 %v49
  %135 = vmatprep.subr.mxu0 0.0
  %136 = vmatpush2.msra.mxu0 %v48
  %137 = vmatprep.subr.mxu0 0.0
  %138 = vmatpush2.msra.mxu0 %v47
  %139 = vmatprep.subr.mxu0 0.0
  %140 = vmatpush2.msra.mxu0 %v46
  %141 = vmatprep.subr.mxu0 0.0
  %142 = vmatpush2.msra.mxu0 %v45
  %143 = vmatprep.subr.mxu0 0.0
  %144 = vmatpush2.msra.mxu0 %v44
  %145 = vmatprep.subr.mxu0 0.0
  %146 = vmatpush2.msra.mxu0 %v43
  %147 = vmatprep.subr.mxu0 0.0
  %148 = vmatpush2.msra.mxu0 %v42
  %149 = vmatprep.subr.mxu0 0.0
  %150 = vmatpush2.msra.mxu0 %v41
  %151 = vmatprep.subr.mxu0 0.0
  %152 = vmatpush2.msra.mxu0 %v40
  %153 = vmatprep.subr.mxu0 0.0
  %154 = vmatpush2.msra.mxu0 %v39
  %155 = vmatprep.subr.mxu0 0.0
  %156 = vmatpush2.msra.mxu0 %v38
  %157 = vmatprep.mubr.f32.mxu0 %v15
  %158 = vmatmul.mubr.f32.gmra.mxu0 %v14
  %v159 = vpop.f32.mrf.mxu0
  %v160 = vadd.f32 %v91, %v159
  %v161 = vpop.f32.mrf.mxu0
  %162 = vmatprep.mubr.f32.mxu0 %v19
  %163 = vmatmul.mubr.f32.gmra.mxu0 %v18
  %v164 = vpop.f32.mrf.mxu0
  %v165 = vadd.f32 %v91, %v164
  %v166 = vpop.f32.mrf.mxu0
  %167 = vdwg.mxu0
  %168 = vmatprep.subr.mxu0 0.0
  %169 = vmatpush1.msra.mxu0 %v69
  %170 = vmatprep.subr.mxu0 0.0
  %171 = vmatpush1.msra.mxu0 %v68
  %172 = vmatprep.subr.mxu0 0.0
  %173 = vmatpush1.msra.mxu0 %v67
  %174 = vmatprep.subr.mxu0 0.0
  %175 = vmatpush1.msra.mxu0 %v66
  %176 = vmatprep.subr.mxu0 0.0
  %177 = vmatpush1.msra.mxu0 %v65
  %178 = vmatprep.subr.mxu0 0.0
  %179 = vmatpush1.msra.mxu0 %v64
  %180 = vmatprep.subr.mxu0 0.0
  %181 = vmatpush1.msra.mxu0 %v63
  %182 = vmatprep.subr.mxu0 0.0
  %183 = vmatpush1.msra.mxu0 %v62
  %184 = vmatprep.subr.mxu0 0.0
  %185 = vmatpush1.msra.mxu0 %v61
  %186 = vmatprep.subr.mxu0 0.0
  %187 = vmatpush1.msra.mxu0 %v60
  %188 = vmatprep.subr.mxu0 0.0
  %189 = vmatpush1.msra.mxu0 %v59
  %190 = vmatprep.subr.mxu0 0.0
  %191 = vmatpush1.msra.mxu0 %v58
  %192 = vmatprep.subr.mxu0 0.0
  %193 = vmatpush1.msra.mxu0 %v57
  %194 = vmatprep.subr.mxu0 0.0
  %195 = vmatpush1.msra.mxu0 %v56
  %196 = vmatprep.subr.mxu0 0.0
  %197 = vmatpush1.msra.mxu0 %v55
  %198 = vmatprep.subr.mxu0 0.0
  %199 = vmatpush1.msra.mxu0 %v54
  %200 = vmatprep.subr.mxu0 0.0
  %201 = vmatpush2.msra.mxu0 %v85
  %202 = vmatprep.subr.mxu0 0.0
  %203 = vmatpush2.msra.mxu0 %v84
  %204 = vmatprep.subr.mxu0 0.0
  %205 = vmatpush2.msra.mxu0 %v83
  %206 = vmatprep.subr.mxu0 0.0
  %207 = vmatpush2.msra.mxu0 %v82
  %208 = vmatprep.subr.mxu0 0.0
  %209 = vmatpush2.msra.mxu0 %v81
  %210 = vmatprep.subr.mxu0 0.0
  %211 = vmatpush2.msra.mxu0 %v80
  %212 = vmatprep.subr.mxu0 0.0
  %213 = vmatpush2.msra.mxu0 %v79
  %214 = vmatprep.subr.mxu0 0.0
  %215 = vmatpush2.msra.mxu0 %v78
  %216 = vmatprep.subr.mxu0 0.0
  %217 = vmatpush2.msra.mxu0 %v77
  %218 = vmatprep.subr.mxu0 0.0
  %219 = vmatpush2.msra.mxu0 %v76
  %220 = vmatprep.subr.mxu0 0.0
  %221 = vmatpush2.msra.mxu0 %v75
  %222 = vmatprep.subr.mxu0 0.0
  %223 = vmatpush2.msra.mxu0 %v74
  %224 = vmatprep.subr.mxu0 0.0
  %225 = vmatpush2.msra.mxu0 %v73
  %226 = vmatprep.subr.mxu0 0.0
  %227 = vmatpush2.msra.mxu0 %v72
  %228 = vmatprep.subr.mxu0 0.0
  %229 = vmatpush2.msra.mxu0 %v71
  %230 = vmatprep.subr.mxu0 0.0
  %231 = vmatpush2.msra.mxu0 %v70
  %232 = vmatprep.mubr.f32.mxu0 %v17
  %233 = vmatmul.mubr.f32.gmra.mxu0 %v16
  %v234 = vpop.f32.mrf.mxu0
  %v235 = vadd.f32 %v160, %v234
  %v236 = vpop.f32.mrf.mxu0
  %237 = vmatprep.mubr.f32.mxu0 %v21
  %238 = vmatmul.mubr.f32.gmra.mxu0 %v20
  %v239 = vpop.f32.mrf.mxu0
  %v240 = vadd.f32 %v165, %v239
  %v241 = vpop.f32.mrf.mxu0
  %242 = vdwg.mxu0
  %243 = vst [vmem:[%s3] sm:$0xff] %v235
  %244 = vst [vmem:[%s3 + $0x8] sm:$0xff] %v240
  // Predicated region
  $region14: #{logreg_forward.1} parent=0 // pred_check
    _
  $region15: #{logreg_forward.1} parent=0 // pred_check_branch
    %246 = sbr.rel (0) target = $region17
  $region16: #{logreg_forward.1} parent=0 // pred_region
    _
  $region17: #{logreg_forward.1} parent=0 // pred_fallthru
    _
  // Predicated region
  $region18: #{logreg_forward.1} parent=0 // pred_check
    _
  $region19: #{logreg_forward.1} parent=0 // pred_check_branch
    %248 = sbr.rel (0) target = $region21
  $region20: #{logreg_forward.1} parent=0 // pred_region
    _
  $region21: #{logreg_forward.1} parent=0 // pred_fallthru
    _

</llo_original>
